<compile_context>
chip_gen: v6e
topology: v6e:2x2x1
jax: 0.10.0
libtpu: 0.0.40
codegen_flags: <defaults>
</compile_context>

<pallas_src>
import math

import jax
import jax.numpy as jnp
from jax import lax
from jax.experimental import pallas as pl
from jax.experimental.pallas import tpu as pltpu


def _round_up(x, m):
    return ((x + m - 1) // m) * m


def _largest_divisor_leq(n, cap):
    """Largest divisor of n that is <= cap (>= 1)."""
    cap = max(1, min(n, cap))
    for d in range(cap, 0, -1):
        if n % d == 0:
            return d
    return 1


def _largest_aligned_divisor(total, cap, align):
    """Largest multiple of `align` dividing `total` with value <= cap, or None."""
    d = (min(cap, total) // align) * align
    while d >= align:
        if total % d == 0:
            return d
        d -= align
    return None


def _chip_budgets():
    """Return (target_tile_bytes, vmem_limit_bytes), generation-aware."""
    try:
        vmem_cap = getattr(pltpu.get_tpu_info(), "vmem_capacity_bytes", None)
    except Exception:
        vmem_cap = None
    if vmem_cap is None:
        # Unknown chip: stay inside every generation's default scoped budget.
        return 4 << 20, 32 << 20
    if vmem_cap <= (64 << 20):
        # v7x-like: 64 MiB per TC -> smaller tiles, headroom under the cap.
        return 5 << 20, 48 << 20
    # v5e / v6e: 128 MiB physical VMEM -> big tiles, 64 MiB scoped budget.
    return 8 << 20, 64 << 20


def _l2_normalize_kernel(x_ref, o_ref):
    # Block: (tile_n, C, tile_hw). dim=1 reduce is a cross-sublane sum.
    x = x_ref[...].astype(jnp.float32)
    # Exact rsqrt + multiply: one EUP op per spatial location instead of C
    # divides. No eps clamp, matching torch's `x / x.norm(p=2, ...)` exactly
    # (an all-zero channel vector intentionally yields inf/nan).
    inv_norm = lax.rsqrt(jnp.sum(x * x, axis=1, keepdims=True))
    o_ref[...] = (x * inv_norm).astype(o_ref.dtype)


def _l2_normalize_kernel_2d(x_ref, o_ref):
    # Block: (tile_n, C) with C on lanes; cross-lane (XLU) reduce — free
    # slot-wise since the kernel is HBM-bandwidth-bound.
    x = x_ref[...].astype(jnp.float32)
    inv_norm = lax.rsqrt(jnp.sum(x * x, axis=-1, keepdims=True))
    o_ref[...] = (x * inv_norm).astype(o_ref.dtype)


def normalize(x: jax.Array) -> jax.Array:
    """L2-normalize over dim=1, matching `x / x.norm(p=2, dim=1, keepdim=True)`."""
    orig_shape = x.shape
    if len(orig_shape) < 2:
        raise ValueError("normalize expects rank >= 2 input (dim=1 reduction)")
    n, c = orig_shape[0], orig_shape[1]
    hw = int(math.prod(orig_shape[2:])) if len(orig_shape) > 2 else 1

    itemsize = jnp.dtype(x.dtype).itemsize
    target_tile_bytes, vmem_limit = _chip_budgets()

    # Live bytes per tile element: double-buffered input + output tiles
    # (4 * itemsize) plus ~3 full-tile f32 intermediates in the body.
    bytes_per_elem_live = 4 * itemsize + 3 * 4
    max_tile_elems = max(1, (vmem_limit - (2 << 20)) // bytes_per_elem_live)
    target_tile_elems = max(1, min(target_tile_bytes // itemsize, max_tile_elems))

    # Sublane padding multiple for the second-to-last block axis.
    sublane = max(1, 32 // itemsize)  # 8 for f32, 16 for bf16, 32 for int8

    cost = pl.CostEstimate(
        flops=3 * n * c * hw,
        transcendentals=n * hw,
        bytes_accessed=2 * n * c * hw * itemsize,
    )

    if hw == 1:
        # Rank-2 / (N, C, 1, 1) inputs: lane-dense layout with C on lanes.
        x_in = x.reshape(n, c)
        out_shape = jax.ShapeDtypeStruct((n, c), x.dtype)
        kernel = _l2_normalize_kernel_2d

        padded_row_elems = _round_up(c, 128)
        max_tile_n = max(1, target_tile_elems // padded_row_elems)
        if n >= 2:
            # >= 2 grid steps so both v7x TensorCores get work (cheap on 1-TC).
            max_tile_n = min(max_tile_n, pl.cdiv(n, 2))
        tile_n = max(sublane, (max_tile_n // sublane) * sublane)
        if tile_n >= n:
            tile_n = n  # full extent is always a legal sublane block size
        grid = (pl.cdiv(n, tile_n),)
        block = (tile_n, c)
        in_specs = [pl.BlockSpec(block, lambda i: (i, 0))]
        out_specs = pl.BlockSpec(block, lambda i: (i, 0))
        dim_sem = ("parallel",)
    else:
        # NCHW-style inputs: channels on sublanes, flattened spatial on lanes.
        x_in = x.reshape(n, c, hw)
        out_shape = jax.ShapeDtypeStruct((n, c, hw), x.dtype)
        kernel = _l2_normalize_kernel

        padded_c = _round_up(c, sublane)                 # real sublane footprint
        per_sample_padded_elems = padded_c * _round_up(hw, 128)

        if per_sample_padded_elems <= target_tile_elems:
            # Small samples: whole (C, HW) slab per sample, batch samples per
            # grid step so DMAs are big and per-step overhead amortizes.
            max_tile_n = max(1, target_tile_elems // per_sample_padded_elems)
            if n >= 2:
                # Keep >= 2 grid steps for v7x's two TensorCores.
                max_tile_n = min(max_tile_n, pl.cdiv(n, 2))
            tile_n = _largest_divisor_leq(n, max_tile_n)  # no ragged last block
            grid = (n // tile_n,)
            block = (tile_n, c, hw)
            in_specs = [pl.BlockSpec(block, lambda i: (i, 0, 0))]
            out_specs = pl.BlockSpec(block, lambda i: (i, 0, 0))
            dim_sem = ("parallel",)
        else:
            # Large samples: tile the spatial (lane) axis. The channel reduce
            # is independent per spatial location, so there is no carry.
            max_tile_hw = max(128, (target_tile_elems // padded_c // 128) * 128)
            tile_hw = _largest_aligned_divisor(hw, max_tile_hw, 128)
            if tile_hw is None:
                # No 128-multiple divisor fits: take the full (legal) extent if
                # it fits, otherwise accept one ragged (masked) tail tile.
                tile_hw = hw if hw <= max_tile_hw else max_tile_hw
            # Ensure even the minimal (1, C, tile_hw) block fits the budget.
            # TODO(synk): pathologically large C would need a channel-tiled
            # two-pass variant; here we only raise the scoped VMEM limit.
            needed = padded_c * _round_up(tile_hw, 128) * bytes_per_elem_live + (2 << 20)
            vmem_limit = max(vmem_limit, needed)
            grid = (n, pl.cdiv(hw, tile_hw))
            block = (1, c, tile_hw)
            in_specs = [pl.BlockSpec(block, lambda i, j: (i, 0, j))]
            out_specs = pl.BlockSpec(block, lambda i, j: (i, 0, j))
            dim_sem = ("parallel", "parallel")

    out = pl.pallas_call(
        kernel,
        out_shape=out_shape,
        grid_spec=pltpu.PrefetchScalarGridSpec(
            num_scalar_prefetch=0,
            grid=grid,
            in_specs=in_specs,
            out_specs=out_specs,
        ),
        compiler_params=pltpu.CompilerParams(
            dimension_semantics=dim_sem,
            vmem_limit_bytes=int(vmem_limit),
        ),
        cost_estimate=cost,
    )(x_in)

    return out.reshape(orig_shape)


if __name__ == "__main__":
    key = jax.random.PRNGKey(0)
    k1, k2 = jax.random.split(key)

    # Small NCHW input consistent with the module's usage.
    x = jax.random.normal(k1, (2, 4, 16, 16), dtype=jnp.float32)
    out = jax.block_until_ready(normalize(x))
    ref = x / jnp.sqrt(jnp.sum(x * x, axis=1, keepdims=True))
    assert out.shape == x.shape and out.dtype == x.dtype
    assert jnp.allclose(out, ref, atol=1e-5, rtol=1e-5)

    # Rank-2 (N, C) input exercises the lane-dense 2D path.
    x2 = jax.random.normal(k2, (4, 256), dtype=jnp.float32)
    out2 = jax.block_until_ready(normalize(x2))
    ref2 = x2 / jnp.sqrt(jnp.sum(x2 * x2, axis=1, keepdims=True))
    assert out2.shape == x2.shape and jnp.allclose(out2, ref2, atol=1e-5, rtol=1e-5)

    print("KERNEL_OK")
</pallas_src>

<mosaic_0001>
module attributes {stable_mosaic.version = 11 : i64} {
  func.func @_l2_normalize_kernel(%arg0: i32, %arg1: memref<1x4x256xf32, #tpu.memory_space<vmem>>, %arg2: memref<1x4x256xf32, #tpu.memory_space<vmem>>) attributes {dimension_semantics = [#tpu.dimension_semantics<parallel>], iteration_bounds = array<i64: 2>, scalar_prefetch = 0 : i64, scratch_operands = 0 : i64, tpu.core_type = #tpu.core_type<tc>, window_params = [{transform_indices = @transform_0, window_bounds = array<i64: 1, 4, 256>}, {transform_indices = @transform_1, window_bounds = array<i64: 1, 4, 256>}]} {
    %c0 = arith.constant 0 : index
    %c0_0 = arith.constant 0 : index
    %c0_1 = arith.constant 0 : index
    %0 = vector.load %arg1[%c0, %c0_0, %c0_1] : memref<1x4x256xf32, #tpu.memory_space<vmem>>, vector<1x4x256xf32>
    %1 = arith.mulf %0, %0 : vector<1x4x256xf32>
    %cst = arith.constant dense<0.000000e+00> : vector<1x256xf32>
    %2 = vector.multi_reduction <add>, %1, %cst [1] : vector<1x4x256xf32> to vector<1x256xf32>
    %3 = vector.shape_cast %2 : vector<1x256xf32> to vector<1x1x256xf32>
    %4 = math.rsqrt %3 : vector<1x1x256xf32>
    %5 = vector.broadcast %4 : vector<1x1x256xf32> to vector<1x4x256xf32>
    %6 = arith.mulf %0, %5 : vector<1x4x256xf32>
    %c0_2 = arith.constant 0 : index
    %c0_3 = arith.constant 0 : index
    %c0_4 = arith.constant 0 : index
    %7 = vector.load %arg2[%c0_2, %c0_3, %c0_4] : memref<1x4x256xf32, #tpu.memory_space<vmem>>, vector<1x4x256xf32>
    tpu.vector_store %arg2[%c0_2, %c0_3, %c0_4], %6 {strides = array<i32>} : memref<1x4x256xf32, #tpu.memory_space<vmem>>, vector<1x4x256xf32>,
    return
  }
  func.func @transform_0(%arg0: i32) -> (i32, i32, i32) {
    %c0_i32 = arith.constant 0 : i32
    %c0_i32_0 = arith.constant 0 : i32
    %c0_i32_1 = arith.constant 0 : i32
    return %arg0, %c0_i32, %c0_i32_0 : i32, i32, i32
  }
  func.func @transform_1(%arg0: i32) -> (i32, i32, i32) {
    %c0_i32 = arith.constant 0 : i32
    %c0_i32_0 = arith.constant 0 : i32
    %c0_i32_1 = arith.constant 0 : i32
    return %arg0, %c0_i32, %c0_i32_0 : i32, i32, i32
  }
}

</mosaic_0001>

<llo_original>
// kernel: tpu_custom_call.1
$region0: #{tpu_custom_call.1}
  #allocation0 [shape = 'u32[]', space=smem, size = 0x4, offset = 0x4, fixed_abs, tag = 'smem constant byte address 0x4 - core index']
  #allocation1 [shape = 'u32[144,128]{1,0:T(1,128)}', space=vmem, size = 0x12000, scoped, tag = 'internal scratch']
  %s0 = inlined_call_operand.hbm [shape: f32[2,4,256], index: 0, kind: input, shape index: {}]
  %s1 = inlined_call_operand.hbm [shape: f32[2,4,256], index: 1, kind: output, shape index: {}]
  %s2 = sld [smem:[#allocation0]]
  $region41: #{tpu_custom_call.1} parent=0
    _
  %s4 = ssub.s32 1, %s2
  %s5 = scalar_select 0, %s4, %s2
  $region1: #{tpu_custom_call.1} parent=0
    #allocation2 [shape = 'u8[8192]{0}', space=vmem, size = 0x2000, scoped, tag = 'input window, operand 0']
    #allocation3 [shape = 's32[2]{0}', space=sflag, size = 0x8, scoped, tag = 'scoped memory for tpu_custom_call.1']
    #allocation4 [shape = 's32[2]{0}', space=sflag, size = 0x8, scoped, tag = 'scoped memory for tpu_custom_call.1']
    #allocation5 [shape = 'u8[8192]{0}', space=vmem, size = 0x2000, scoped, tag = 'output window, operand 0']
    %6 = vsyncpa [#allocation3], 0
    %s7 = scalar_lea.sflag [#allocation3], 1
    %8 = vsyncpa %s7, 0
    %9 = vsyncpa [#allocation4], 0
    %s10 = scalar_lea.sflag [#allocation4], 1
    %11 = vsyncpa %s10, 0
    loop: start=0, step=1, limit=4
    $region2: #{tpu_custom_call.1} parent=1 // loop_pre_header
      _
    $region3: #{tpu_custom_call.1} parent=1 // loop_header
      %s13 = sphi 0, %s17
      %p14 = scmp.ge.s32.totalorder %s13, 4
      %s23 = sphi 0, %s25
      %s26 = sphi 0, %s23
      %s27 = sphi 0, %s26
      %s43 = sphi 0, %s27
      %s49 = sphi 0, %s51
      %s52 = sphi 0, %s49
      %s53 = sphi 0, %s52
      %s69 = sphi 0, %s53
    $region4: #{tpu_custom_call.1} parent=1 // loop_header_branch
      %16 = sbr.rel (%p14) target = $region8
    $region5: #{tpu_custom_call.1} parent=1 // loop_body
      %s18 = ssub.s32 %s13, 1
      %s19 = ssub.s32 %s13, 2
      %s20 = sadd.s32 %s13, 1
      %s21 = ssub.s32 %s13, %s20
      %p22 = scmp.eq.s32.totalorder %s21, 0
      %s24 = sadd.s32 %s23, 1
      %s25 = scalar_select %p22, %s23, %s24
      %p28 = pneg %p22
      %p29 = scmp.eq.s32.totalorder %s13, 1
      %p30 = por %p28, %p29
      %p31 = scmp.ne.s32.totalorder %s23, %s26
      %p32 = scmp.eq.s32.totalorder %s13, 0
      %p33 = por %p31, %p32
      %p34 = scmp.ne.s32.totalorder %s23, %s26
      %p35 = scmp.eq.s32.totalorder %s18, 1
      %p36 = por %p34, %p35
      %p37 = scmp.ne.s32.totalorder %s26, %s27
      %p38 = scmp.eq.s32.totalorder %s18, 0
      %p39 = por %p37, %p38
      %p40 = scmp.ne.s32.totalorder %s26, %s27
      %p41 = scmp.eq.s32.totalorder %s19, 1
      %p42 = por %p40, %p41
      %p44 = scmp.ne.s32.totalorder %s27, %s43
      %p45 = scmp.eq.s32.totalorder %s19, 0
      %p46 = por %p44, %p45
      %s47 = ssub.s32 %s13, %s20
      %p48 = scmp.eq.s32.totalorder %s47, 0
      %s50 = sadd.s32 %s49, 1
      %s51 = scalar_select %p48, %s49, %s50
      %p54 = pneg %p48
      %p55 = scmp.eq.s32.totalorder %s13, 1
      %p56 = por %p54, %p55
      %p57 = scmp.ne.s32.totalorder %s49, %s52
      %p58 = scmp.eq.s32.totalorder %s13, 0
      %p59 = por %p57, %p58
      %p60 = scmp.ne.s32.totalorder %s49, %s52
      %p61 = scmp.eq.s32.totalorder %s18, 1
      %p62 = por %p60, %p61
      %p63 = scmp.ne.s32.totalorder %s52, %s53
      %p64 = scmp.eq.s32.totalorder %s18, 0
      %p65 = por %p63, %p64
      %p66 = scmp.ne.s32.totalorder %s52, %s53
      %p67 = scmp.eq.s32.totalorder %s19, 1
      %p68 = por %p66, %p67
      %p70 = scmp.ne.s32.totalorder %s53, %s69
      %p71 = scmp.eq.s32.totalorder %s19, 0
      %p72 = por %p70, %p71
      %p73 = scmp.le.s32.totalorder 1, %s13
      %p74 = scmp.lt.s32.totalorder %s13, 3
      %p75 = pnand %p73, %p74
      %p76 = pneg %p75
      // Predicated region
      $region9: #{tpu_custom_call.1} parent=5 // pred_check
        _
      $region10: #{tpu_custom_call.1} parent=5 // pred_check_branch
        %78 = sbr.rel (%p75) target = $region12
      $region11: #{tpu_custom_call.1} parent=5 // pred_region
        %s79 = ssub.s32 %s13, 1
      $region12: #{tpu_custom_call.1} parent=5 // pred_fallthru
        _
      %p80 = scmp.lt.s32.totalorder %s13, 2
      // Predicated region
      $region13: #{tpu_custom_call.1} parent=5 // pred_check
        %p81 = pneg %p80
      $region14: #{tpu_custom_call.1} parent=5 // pred_check_branch
        %83 = sbr.rel (%p81) target = $region16
      $region15: #{tpu_custom_call.1} parent=5 // pred_region
        // Predicated region
        $region17: #{tpu_custom_call.1} parent=15 // pred_check
          %p84 = pneg %p33
        $region18: #{tpu_custom_call.1} parent=15 // pred_check_branch
          %86 = sbr.rel (%p84) target = $region20
        $region19: #{tpu_custom_call.1} parent=15 // pred_region
          %s87 = sand.u32 %s23, 1
          %s88 = scalar_lea.sflag [#allocation3], %s87
          %s89 = sand.u32 %s23, 1
          %s90 = smul.addr %s89, 8
          %s91 = scalar_lea.vmem [#allocation2], %s90
          %s93 = ssub.s32 128, 128
          %94 = vsyncadd %s88, %s93
          %s95 = smul.addr %s13, 2
          %s96 = smul.addr %s95, 64
          %s97 = scalar_lea.hbm %s0, %s96
          %s99 = sshll.u32 %s91, 4
          %s100 = int_to_ptr.vmem [resolvable:$true] %s99
          %102 = dma.hbm_to_vmem [thread:$0]  %s97, 128, %s100, %s88
        $region20: #{tpu_custom_call.1} parent=15 // pred_fallthru
          _
      $region16: #{tpu_custom_call.1} parent=5 // pred_fallthru
        _
      %p103 = scmp.le.s32.totalorder 1, %s13
      %p104 = scmp.lt.s32.totalorder %s13, 3
      %p105 = pnand %p103, %p104
      %p106 = pneg %p105
      // Predicated region
      $region21: #{tpu_custom_call.1} parent=5 // pred_check
        _
      $region22: #{tpu_custom_call.1} parent=5 // pred_check_branch
        %108 = sbr.rel (%p105) target = $region24
      $region23: #{tpu_custom_call.1} parent=5 // pred_region
        %s109 = ssub.s32 %s13, 1
        %s110 = sand.u32 %s26, 1
        %s111 = scalar_lea.sflag [#allocation3], %s110
        %s112 = sand.u32 %s26, 1
        %s113 = smul.addr %s112, 8
        %s114 = scalar_lea.vmem [#allocation2], %s113
        // Predicated region
        $region25: #{tpu_custom_call.1} parent=23 // pred_check
          %p115 = pneg %p39
        $region26: #{tpu_custom_call.1} parent=23 // pred_check_branch
          %117 = sbr.rel (%p115) target = $region28
        $region27: #{tpu_custom_call.1} parent=23 // pred_region
          %118 = dma.done %s111, 128
        $region28: #{tpu_custom_call.1} parent=23 // pred_fallthru
          _
        %s119 = sand.u32 %s26, 1
        %s120 = scalar_lea.sflag [#allocation3], %s119
        %s121 = sand.u32 %s26, 1
        %s122 = smul.addr %s121, 8
        %s123 = scalar_lea.vmem [#allocation2], %s122
        %p124 = pneg %p39
        %p125 = pneg %p36
        %p126 = pneg %p65
        %p127 = pneg %p62
        %s128 = sand.u32 %s52, 1
        %s129 = scalar_lea.sflag [#allocation4], %s128
        %s130 = sand.u32 %s52, 1
        %s131 = smul.addr %s130, 8
        %s132 = scalar_lea.vmem [#allocation5], %s131
        %v133 = vld [vmem:[%s114] sm:$0xff]
        %v134 = vmul.f32 %v133, %v133
        %v136 = vcombine.high %v134, %v134
        %vm138 = vcmask 1043456
        %v139 = vsel %vm138, %v134, 0.0
        %v140 = vrot.slane %v139, 4
        %v141 = vadd.f32 %v139, %v140
        %v142 = vrot.slane %v141, 2
        %v143 = vadd.f32 %v141, %v142
        %v144 = vrot.slane %v143, 1
        %v145 = vadd.f32 %v143, %v144
        %v146 = vsel %vm138, %v136, 0.0
        %v147 = vrot.slane %v146, 4
        %v148 = vadd.f32 %v146, %v147
        %v149 = vrot.slane %v148, 2
        %v150 = vadd.f32 %v148, %v149
        %v151 = vrot.slane %v150, 1
        %v152 = vadd.f32 %v150, %v151
        %v153 = vrsqrt.pop %v145
        %v154 = vrsqrt.pop %v152
        %v157 = vcombine.low %v153, %v154
        %v159 = vmul.f32 %v133, %v157
        %160 = vst [vmem:[%s132] sm:$0xff] %v159
        %s161 = sand.u32 %s52, 1
        %s162 = scalar_lea.sflag [#allocation4], %s161
        %s163 = sand.u32 %s52, 1
        %s164 = smul.addr %s163, 8
        %s165 = scalar_lea.vmem [#allocation5], %s164
        // Predicated region
        $region29: #{tpu_custom_call.1} parent=23 // pred_check
          %p166 = pneg %p62
        $region30: #{tpu_custom_call.1} parent=23 // pred_check_branch
          %168 = sbr.rel (%p166) target = $region32
        $region31: #{tpu_custom_call.1} parent=23 // pred_region
          %s170 = ssub.s32 128, 128
          %171 = vsyncadd %s162, %s170
          %s172 = smul.addr %s18, 2
          %s173 = smul.addr %s172, 64
          %s174 = scalar_lea.hbm %s1, %s173
          %s176 = sshll.u32 %s165, 4
          %s177 = int_to_ptr.vmem [resolvable:$true] %s176
          %179 = dma.vmem_to_hbm [thread:$0]  %s177, 128, %s174, %s162
        $region32: #{tpu_custom_call.1} parent=23 // pred_fallthru
          _
      $region24: #{tpu_custom_call.1} parent=5 // pred_fallthru
        _
      %p180 = scmp.le.s32.totalorder 2, %s13
      // Predicated region
      $region33: #{tpu_custom_call.1} parent=5 // pred_check
        %p181 = pneg %p180
      $region34: #{tpu_custom_call.1} parent=5 // pred_check_branch
        %183 = sbr.rel (%p181) target = $region36
      $region35: #{tpu_custom_call.1} parent=5 // pred_region
        %s184 = ssub.s32 %s13, 2
        // Predicated region
        $region37: #{tpu_custom_call.1} parent=35 // pred_check
          %p185 = pneg %p68
        $region38: #{tpu_custom_call.1} parent=35 // pred_check_branch
          %187 = sbr.rel (%p185) target = $region40
        $region39: #{tpu_custom_call.1} parent=35 // pred_region
          %s188 = sand.u32 %s53, 1
          %s189 = scalar_lea.sflag [#allocation4], %s188
          %s190 = sand.u32 %s53, 1
          %s191 = smul.addr %s190, 8
          %s192 = scalar_lea.vmem [#allocation5], %s191
          %193 = dma.done %s189, 128
        $region40: #{tpu_custom_call.1} parent=35 // pred_fallthru
          _
      $region36: #{tpu_custom_call.1} parent=5 // pred_fallthru
        _
    $region6: #{tpu_custom_call.1} parent=1 // loop_footer
      %s17 = sadd.s32 1, %s13
    $region7: #{tpu_custom_call.1} parent=1 // loop_footer_branch
      %12 = sbr.rel target = $region3
    $region8: #{tpu_custom_call.1} parent=1 // loop_exit
      _
    %194 = vsyncpa [#allocation3], 1
    %s195 = scalar_lea.sflag [#allocation3], 1
    %196 = vsyncpa %s195, 1
    %197 = vsyncpa [#allocation4], 1
    %s198 = scalar_lea.sflag [#allocation4], 1
    %199 = vsyncpa %s198, 1

</llo_original>
